<compile_context>
chip_gen: v7x
topology: tpu7x:2x2x1
jax: 0.10.0
libtpu: 0.0.40
codegen_flags: <defaults>
</compile_context>

<pallas_src>
import jax
import jax.numpy as jnp
from jax.experimental import pallas as pl
from jax.experimental.pallas import tpu as pltpu


def _pick_tiles(N, C, S, elem_bytes, budget_bytes=2 << 20):
    """Pick (tN, tS) block sizes.

    tS: largest lane-aligned (multiple of 128) divisor of S that keeps one
        (1, C, tS) block under `budget_bytes`, or S itself if S fits.
    tN: if the full spatial extent fits in one block (tS == S), the largest
        divisor of N that keeps a (tN, C, S) block under `budget_bytes`.
    """
    per_row = max(1, C * elem_bytes)
    max_lanes = max(128, budget_bytes // per_row)

    if S <= max_lanes:
        tS = S
    else:
        tS = None
        t = (max_lanes // 128) * 128
        while t >= 128:
            if S % t == 0:
                tS = t
                break
            t -= 128
        if tS is None:
            # TODO(synk): no lane-aligned divisor fits the budget and
            # partial-tile masking is not implemented; fall back to the full
            # spatial extent.
            tS = S

    tN = 1
    if tS == S:
        max_tn = max(1, budget_bytes // max(1, C * S * elem_bytes))
        for cand in range(min(N, max_tn), 0, -1):
            if N % cand == 0:
                tN = cand
                break
    return tN, tS


def _make_stats_kernel(eps, inv_count, tn):
    def stats_kernel(x_ref, g_ref, b_ref, ss_ref, sum_ref, sq_ref):
        n = pl.program_id(0)
        s = pl.program_id(1)

        @pl.when((n == 0) & (s == 0))
        def _():
            sum_ref[...] = jnp.zeros_like(sum_ref)
            sq_ref[...] = jnp.zeros_like(sq_ref)

        x = x_ref[...].astype(jnp.float32)                    # (tN, C, tS)
        # Lane-axis reduce only (cheap, XLU); keep per-sample partials in the
        # (tN, C, 1) accumulators and fold the tN axis once, at finalize.
        sum_ref[...] += jnp.sum(x, axis=2, keepdims=True)     # (tN, C, 1)
        sq_ref[...] += jnp.sum(x * x, axis=2, keepdims=True)  # (tN, C, 1)

        @pl.when((n == pl.num_programs(0) - 1) &
                 (s == pl.num_programs(1) - 1))
        def _():
            total_s = sum_ref[0:1]                            # (1, C, 1)
            total_q = sq_ref[0:1]
            for i in range(1, tn):                            # static unroll
                total_s = total_s + sum_ref[i:i + 1]
                total_q = total_q + sq_ref[i:i + 1]
            mean = total_s * inv_count
            # Biased variance (what PyTorch uses for the normalization itself).
            var = total_q * inv_count - mean * mean
            inv_std = jax.lax.rsqrt(var + eps)
            scale = g_ref[...].astype(jnp.float32) * inv_std  # (1, C, 1)
            shift = b_ref[...].astype(jnp.float32) - mean * scale
            ss_ref[0:1] = scale
            ss_ref[1:2] = shift

    return stats_kernel


def _norm_kernel(ss_ref, x_ref, o_ref):
    ss = ss_ref[...]                          # (2, C, 1) fp32: scale / shift
    x = x_ref[...].astype(jnp.float32)        # (tN, C, tS)
    y = x * ss[0:1] + ss[1:2]                 # single fused scale+shift
    o_ref[...] = y.astype(o_ref.dtype)


def batchnorm2d_forward(x, gamma, beta, eps):
    """BatchNorm2d forward (training-mode batch stats) on NCHW input.

    x:     [N, C, H, W]
    gamma: [C]  (weight)
    beta:  [C]  (bias)
    """
    N, C, H, W = x.shape
    S = H * W
    x3 = x.reshape(N, C, S)                        # free view of NCHW
    g3 = gamma.reshape(1, C, 1).astype(jnp.float32)
    b3 = beta.reshape(1, C, 1).astype(jnp.float32)

    tN, tS = _pick_tiles(N, C, S, jnp.dtype(x.dtype).itemsize)
    grid = (N // tN, S // tS)
    inv_count = 1.0 / float(N * S)

    # ---- Pass 1: per-channel batch stats -> fused (scale, shift) ----
    scale_shift = pl.pallas_call(
        _make_stats_kernel(float(eps), inv_count, tN),
        out_shape=jax.ShapeDtypeStruct((2, C, 1), jnp.float32),
        grid_spec=pltpu.PrefetchScalarGridSpec(
            num_scalar_prefetch=0,
            grid=grid,
            in_specs=[
                pl.BlockSpec((tN, C, tS), lambda n, s: (n, 0, s)),
                pl.BlockSpec((1, C, 1), lambda n, s: (0, 0, 0)),
                pl.BlockSpec((1, C, 1), lambda n, s: (0, 0, 0)),
            ],
            out_specs=pl.BlockSpec((2, C, 1), lambda n, s: (0, 0, 0)),
            scratch_shapes=[
                pltpu.VMEM((tN, C, 1), jnp.float32),   # running sum
                pltpu.VMEM((tN, C, 1), jnp.float32),   # running sum of squares
            ],
        ),
        compiler_params=pltpu.CompilerParams(
            dimension_semantics=("arbitrary", "arbitrary"),
            vmem_limit_bytes=32 << 20,
        ),
    )(x3, g3, b3)

    # ---- Pass 2: elementwise normalize (lane-dense, fully parallel) ----
    out3 = pl.pallas_call(
        _norm_kernel,
        out_shape=jax.ShapeDtypeStruct((N, C, S), x.dtype),
        grid_spec=pltpu.PrefetchScalarGridSpec(
            num_scalar_prefetch=0,
            grid=grid,
            in_specs=[
                pl.BlockSpec((2, C, 1), lambda n, s: (0, 0, 0)),
                pl.BlockSpec((tN, C, tS), lambda n, s: (n, 0, s)),
            ],
            out_specs=pl.BlockSpec((tN, C, tS), lambda n, s: (n, 0, s)),
        ),
        compiler_params=pltpu.CompilerParams(
            dimension_semantics=("parallel", "parallel"),
            vmem_limit_bytes=32 << 20,
        ),
    )(scale_shift, x3)

    return out3.reshape(N, C, H, W)


# TODO(synk): running_mean/running_var (momentum) updates are a training-mode
# side effect with no output-affecting equivalent here; the bogus MaxUnpool2d /
# `indices` in the original module is not translatable (it would error in
# PyTorch as well).


if __name__ == "__main__":
    num_features = 4
    eps = 1e-5
    momentum = 0.1  # only affects running-stat updates, not the forward output

    key = jax.random.PRNGKey(0)
    x = jax.random.normal(key, (2, num_features, 16, 16), dtype=jnp.float32)

    # Deterministic affine params (non-trivial to exercise the scale/shift path;
    # nn.BatchNorm2d defaults would be gamma=1, beta=0).
    gamma = 1.0 + 0.1 * jnp.arange(num_features, dtype=jnp.float32)
    beta = 0.05 * jnp.arange(num_features, dtype=jnp.float32) - 0.1

    out = batchnorm2d_forward(x, gamma, beta, eps)
    out = jax.block_until_ready(out)

    # Pure-JAX reference (training-mode batch stats, biased variance).
    mean = jnp.mean(x, axis=(0, 2, 3), keepdims=True)
    var = jnp.mean((x - mean) ** 2, axis=(0, 2, 3), keepdims=True)
    ref = (x - mean) / jnp.sqrt(var + eps) * gamma.reshape(1, -1, 1, 1) \
        + beta.reshape(1, -1, 1, 1)

    assert out.shape == x.shape
    assert jnp.allclose(out, ref, atol=3e-5, rtol=3e-5), \
        float(jnp.max(jnp.abs(out - ref)))

    print("KERNEL_OK")
</pallas_src>

<mosaic_0001>
module attributes {stable_mosaic.version = 11 : i64} {
  func.func @stats_kernel(%arg0: i32, %arg1: i32, %arg2: memref<2x4x256xf32, #tpu.memory_space<vmem>>, %arg3: memref<1x4x1xf32, #tpu.memory_space<vmem>>, %arg4: memref<1x4x1xf32, #tpu.memory_space<vmem>>, %arg5: memref<2x4x1xf32, #tpu.memory_space<vmem>>, %arg6: memref<2x4x1xf32, #tpu.memory_space<vmem>>, %arg7: memref<2x4x1xf32, #tpu.memory_space<vmem>>) attributes {dimension_semantics = [#tpu.dimension_semantics<arbitrary>, #tpu.dimension_semantics<arbitrary>], iteration_bounds = array<i64: 1, 1>, scalar_prefetch = 0 : i64, scratch_operands = 2 : i64, tpu.core_type = #tpu.core_type<tc>, window_params = [{transform_indices = @transform_0, window_bounds = array<i64: 2, 4, 256>}, {pipeline_mode = #tpu.pipeline_mode<synchronous>, transform_indices = @transform_1, window_bounds = array<i64: 1, 4, 1>}, {pipeline_mode = #tpu.pipeline_mode<synchronous>, transform_indices = @transform_2, window_bounds = array<i64: 1, 4, 1>}, {pipeline_mode = #tpu.pipeline_mode<synchronous>, transform_indices = @transform_3, window_bounds = array<i64: 2, 4, 1>}]} {
    %c0_i32 = arith.constant 0 : i32
    %0 = arith.cmpi eq, %arg0, %c0_i32 : i32
    %c0_i32_0 = arith.constant 0 : i32
    %1 = arith.cmpi eq, %arg1, %c0_i32_0 : i32
    %2 = arith.andi %0, %1 : i1
    %3 = arith.extui %2 : i1 to i32
    %c0_i32_1 = arith.constant 0 : i32
    %4 = arith.cmpi ne, %3, %c0_i32_1 : i32
    scf.if %4 {
      %cst_20 = arith.constant 0.000000e+00 : f32
      %22 = vector.broadcast %cst_20 : f32 to vector<2x4x1xf32>
      %c0_21 = arith.constant 0 : index
      %c0_22 = arith.constant 0 : index
      %c0_23 = arith.constant 0 : index
      %23 = vector.load %arg6[%c0_21, %c0_22, %c0_23] : memref<2x4x1xf32, #tpu.memory_space<vmem>>, vector<2x4x1xf32>
      tpu.vector_store %arg6[%c0_21, %c0_22, %c0_23], %22 {strides = array<i32>} : memref<2x4x1xf32, #tpu.memory_space<vmem>>, vector<2x4x1xf32>,
      %cst_24 = arith.constant 0.000000e+00 : f32
      %24 = vector.broadcast %cst_24 : f32 to vector<2x4x1xf32>
      %c0_25 = arith.constant 0 : index
      %c0_26 = arith.constant 0 : index
      %c0_27 = arith.constant 0 : index
      %25 = vector.load %arg7[%c0_25, %c0_26, %c0_27] : memref<2x4x1xf32, #tpu.memory_space<vmem>>, vector<2x4x1xf32>
      tpu.vector_store %arg7[%c0_25, %c0_26, %c0_27], %24 {strides = array<i32>} : memref<2x4x1xf32, #tpu.memory_space<vmem>>, vector<2x4x1xf32>,
    } else {
    }
    %c0 = arith.constant 0 : index
    %c0_2 = arith.constant 0 : index
    %c0_3 = arith.constant 0 : index
    %5 = vector.load %arg2[%c0, %c0_2, %c0_3] : memref<2x4x256xf32, #tpu.memory_space<vmem>>, vector<2x4x256xf32>
    %c0_4 = arith.constant 0 : index
    %c0_5 = arith.constant 0 : index
    %c0_6 = arith.constant 0 : index
    %6 = vector.load %arg6[%c0_4, %c0_5, %c0_6] : memref<2x4x1xf32, #tpu.memory_space<vmem>>, vector<2x4x1xf32>
    %cst = arith.constant dense<0.000000e+00> : vector<2x4xf32>
    %7 = vector.multi_reduction <add>, %5, %cst [2] : vector<2x4x256xf32> to vector<2x4xf32>
    %8 = vector.shape_cast %7 : vector<2x4xf32> to vector<2x4x1xf32>
    %9 = arith.addf %6, %8 : vector<2x4x1xf32>
    %c0_7 = arith.constant 0 : index
    %c0_8 = arith.constant 0 : index
    %c0_9 = arith.constant 0 : index
    %10 = vector.load %arg6[%c0_7, %c0_8, %c0_9] : memref<2x4x1xf32, #tpu.memory_space<vmem>>, vector<2x4x1xf32>
    tpu.vector_store %arg6[%c0_7, %c0_8, %c0_9], %9 {strides = array<i32>} : memref<2x4x1xf32, #tpu.memory_space<vmem>>, vector<2x4x1xf32>,
    %c0_10 = arith.constant 0 : index
    %c0_11 = arith.constant 0 : index
    %c0_12 = arith.constant 0 : index
    %11 = vector.load %arg7[%c0_10, %c0_11, %c0_12] : memref<2x4x1xf32, #tpu.memory_space<vmem>>, vector<2x4x1xf32>
    %12 = arith.mulf %5, %5 : vector<2x4x256xf32>
    %cst_13 = arith.constant dense<0.000000e+00> : vector<2x4xf32>
    %13 = vector.multi_reduction <add>, %12, %cst_13 [2] : vector<2x4x256xf32> to vector<2x4xf32>
    %14 = vector.shape_cast %13 : vector<2x4xf32> to vector<2x4x1xf32>
    %15 = arith.addf %11, %14 : vector<2x4x1xf32>
    %c0_14 = arith.constant 0 : index
    %c0_15 = arith.constant 0 : index
    %c0_16 = arith.constant 0 : index
    %16 = vector.load %arg7[%c0_14, %c0_15, %c0_16] : memref<2x4x1xf32, #tpu.memory_space<vmem>>, vector<2x4x1xf32>
    tpu.vector_store %arg7[%c0_14, %c0_15, %c0_16], %15 {strides = array<i32>} : memref<2x4x1xf32, #tpu.memory_space<vmem>>, vector<2x4x1xf32>,
    %c0_i32_17 = arith.constant 0 : i32
    %17 = arith.cmpi eq, %arg0, %c0_i32_17 : i32
    %c0_i32_18 = arith.constant 0 : i32
    %18 = arith.cmpi eq, %arg1, %c0_i32_18 : i32
    %19 = arith.andi %17, %18 : i1
    %20 = arith.extui %19 : i1 to i32
    %c0_i32_19 = arith.constant 0 : i32
    %21 = arith.cmpi ne, %20, %c0_i32_19 : i32
    scf.if %21 {
      %c0_20 = arith.constant 0 : index
      %c0_21 = arith.constant 0 : index
      %c0_22 = arith.constant 0 : index
      %22 = vector.load %arg6[%c0_20, %c0_21, %c0_22] : memref<2x4x1xf32, #tpu.memory_space<vmem>>, vector<1x4x1xf32>
      %c0_23 = arith.constant 0 : index
      %c0_24 = arith.constant 0 : index
      %c0_25 = arith.constant 0 : index
      %23 = vector.load %arg7[%c0_23, %c0_24, %c0_25] : memref<2x4x1xf32, #tpu.memory_space<vmem>>, vector<1x4x1xf32>
      %c1 = arith.constant 1 : index
      %c0_26 = arith.constant 0 : index
      %c0_27 = arith.constant 0 : index
      %24 = vector.load %arg6[%c1, %c0_26, %c0_27] : memref<2x4x1xf32, #tpu.memory_space<vmem>>, vector<1x4x1xf32>
      %25 = arith.addf %22, %24 : vector<1x4x1xf32>
      %c1_28 = arith.constant 1 : index
      %c0_29 = arith.constant 0 : index
      %c0_30 = arith.constant 0 : index
      %26 = vector.load %arg7[%c1_28, %c0_29, %c0_30] : memref<2x4x1xf32, #tpu.memory_space<vmem>>, vector<1x4x1xf32>
      %27 = arith.addf %23, %26 : vector<1x4x1xf32>
      %cst_31 = arith.constant 0.001953125 : f32
      %28 = vector.broadcast %cst_31 : f32 to vector<1x4x1xf32>
      %29 = arith.mulf %25, %28 : vector<1x4x1xf32>
      %cst_32 = arith.constant 0.001953125 : f32
      %30 = vector.broadcast %cst_32 : f32 to vector<1x4x1xf32>
      %31 = arith.mulf %27, %30 : vector<1x4x1xf32>
      %32 = arith.mulf %29, %29 : vector<1x4x1xf32>
      %33 = arith.subf %31, %32 : vector<1x4x1xf32>
      %cst_33 = arith.constant 9.99999974E-6 : f32
      %34 = vector.broadcast %cst_33 : f32 to vector<1x4x1xf32>
      %35 = arith.addf %33, %34 : vector<1x4x1xf32>
      %36 = math.rsqrt %35 : vector<1x4x1xf32>
      %c0_34 = arith.constant 0 : index
      %c0_35 = arith.constant 0 : index
      %c0_36 = arith.constant 0 : index
      %37 = vector.load %arg3[%c0_34, %c0_35, %c0_36] : memref<1x4x1xf32, #tpu.memory_space<vmem>>, vector<1x4x1xf32>
      %38 = arith.mulf %37, %36 : vector<1x4x1xf32>
      %c0_37 = arith.constant 0 : index
      %c0_38 = arith.constant 0 : index
      %c0_39 = arith.constant 0 : index
      %39 = vector.load %arg4[%c0_37, %c0_38, %c0_39] : memref<1x4x1xf32, #tpu.memory_space<vmem>>, vector<1x4x1xf32>
      %40 = arith.mulf %29, %38 : vector<1x4x1xf32>
      %41 = arith.subf %39, %40 : vector<1x4x1xf32>
      %c0_40 = arith.constant 0 : index
      %c0_41 = arith.constant 0 : index
      %c0_42 = arith.constant 0 : index
      %42 = vector.load %arg5[%c0_40, %c0_41, %c0_42] : memref<2x4x1xf32, #tpu.memory_space<vmem>>, vector<1x4x1xf32>
      tpu.vector_store %arg5[%c0_40, %c0_41, %c0_42], %38 {strides = array<i32>} : memref<2x4x1xf32, #tpu.memory_space<vmem>>, vector<1x4x1xf32>,
      %c1_43 = arith.constant 1 : index
      %c0_44 = arith.constant 0 : index
      %c0_45 = arith.constant 0 : index
      %43 = vector.load %arg5[%c1_43, %c0_44, %c0_45] : memref<2x4x1xf32, #tpu.memory_space<vmem>>, vector<1x4x1xf32>
      tpu.vector_store %arg5[%c1_43, %c0_44, %c0_45], %41 {strides = array<i32>} : memref<2x4x1xf32, #tpu.memory_space<vmem>>, vector<1x4x1xf32>,
    } else {
    }
    return
  }
  func.func @transform_0(%arg0: i32, %arg1: i32) -> (i32, i32, i32) {
    %c0_i32 = arith.constant 0 : i32
    %c0_i32_0 = arith.constant 0 : i32
    return %arg0, %c0_i32, %arg1 : i32, i32, i32
  }
  func.func @transform_1(%arg0: i32, %arg1: i32) -> (i32, i32, i32) {
    %c0_i32 = arith.constant 0 : i32
    %c0_i32_0 = arith.constant 0 : i32
    %c0_i32_1 = arith.constant 0 : i32
    %c0_i32_2 = arith.constant 0 : i32
    return %c0_i32, %c0_i32_0, %c0_i32_1 : i32, i32, i32
  }
  func.func @transform_2(%arg0: i32, %arg1: i32) -> (i32, i32, i32) {
    %c0_i32 = arith.constant 0 : i32
    %c0_i32_0 = arith.constant 0 : i32
    %c0_i32_1 = arith.constant 0 : i32
    %c0_i32_2 = arith.constant 0 : i32
    return %c0_i32, %c0_i32_0, %c0_i32_1 : i32, i32, i32
  }
  func.func @transform_3(%arg0: i32, %arg1: i32) -> (i32, i32, i32) {
    %c0_i32 = arith.constant 0 : i32
    %c0_i32_0 = arith.constant 0 : i32
    %c0_i32_1 = arith.constant 0 : i32
    %c0_i32_2 = arith.constant 0 : i32
    return %c0_i32, %c0_i32_0, %c0_i32_1 : i32, i32, i32
  }
}

</mosaic_0001>

<llo_original>
// kernel: tpu_custom_call.1
$region0: #{tpu_custom_call.1}
  #allocation0 [shape = 'u32[]', space=smem, size = 0x4, offset = 0x4, fixed_abs, tag = 'smem constant byte address 0x4 - core index']
  #allocation1 [shape = 'u32[144,128]{1,0:T(1,128)}', space=vmem, size = 0x12000, scoped, tag = 'internal scratch']
  #allocation2 [shape = 'f32[2,4,1]{2,1,0:T(4,128)}', space=vmem, size = 0x1000, scoped, tag = 'scratch operand']
  #allocation3 [shape = 'f32[2,4,1]{2,1,0:T(4,128)}', space=vmem, size = 0x1000, scoped, tag = 'scratch operand']
  %s0 = inlined_call_operand.hbm [shape: f32[2,4,256], index: 0, kind: input, shape index: {}]
  %s1 = inlined_call_operand.vmem [shape: f32[1,4,1], index: 1, kind: input, shape index: {}]
  %s2 = inlined_call_operand.vmem [shape: f32[1,4,1], index: 2, kind: input, shape index: {}]
  %s3 = inlined_call_operand.vmem [shape: f32[2,4,1], index: 3, kind: output, shape index: {}]
  %s4 = sld [smem:[#allocation0]]
  $region34: #{tpu_custom_call.1} parent=0
    _
  %s6 = ssub.s32 1, %s4
  %s7 = scalar_select 0, %s6, %s4
  $region1: #{tpu_custom_call.1} parent=0
    #allocation4 [shape = 'u8[8192]{0}', space=vmem, size = 0x2000, scoped, tag = 'input window, operand 0, single buffered']
    #allocation5 [shape = 's32[1]{0}', space=sflag, size = 0x4, scoped, tag = 'scoped memory for tpu_custom_call.1']
    %8 = vsyncpa [#allocation5], 0
    // Predicated region
    $region2: #{tpu_custom_call.1} parent=1 // pred_check
      _
    $region3: #{tpu_custom_call.1} parent=1 // pred_check_branch
      %10 = sbr.rel (0) target = $region5
    $region4: #{tpu_custom_call.1} parent=1 // pred_region
      %s12 = ssub.s32 256, 256
      %13 = vsyncadd [#allocation5], %s12
      %s14 = sshll.u32 [#allocation4], 4
      %s15 = int_to_ptr.vmem [resolvable:$true] %s14
      %20 = dma.hbm_to_vmem [thread:$0]  %s0, 256, %s15, [#allocation5], 128, 128, 8
    $region5: #{tpu_custom_call.1} parent=1 // pred_fallthru
      _
    // Predicated region
    $region6: #{tpu_custom_call.1} parent=1 // pred_check
      _
    $region7: #{tpu_custom_call.1} parent=1 // pred_check_branch
      %22 = sbr.rel (0) target = $region9
    $region8: #{tpu_custom_call.1} parent=1 // pred_region
      _
    $region9: #{tpu_custom_call.1} parent=1 // pred_fallthru
      _
    // Predicated region
    $region10: #{tpu_custom_call.1} parent=1 // pred_check
      _
    $region11: #{tpu_custom_call.1} parent=1 // pred_check_branch
      %24 = sbr.rel (0) target = $region13
    $region12: #{tpu_custom_call.1} parent=1 // pred_region
      _
    $region13: #{tpu_custom_call.1} parent=1 // pred_fallthru
      _
    // Predicated region
    $region14: #{tpu_custom_call.1} parent=1 // pred_check
      _
    $region15: #{tpu_custom_call.1} parent=1 // pred_check_branch
      %26 = sbr.rel (0) target = $region17
    $region16: #{tpu_custom_call.1} parent=1 // pred_region
      %27 = dma.done [#allocation5], 256
    $region17: #{tpu_custom_call.1} parent=1 // pred_fallthru
      _
    %p28 = scmp.eq.s32.totalorder 0, 0
    %p29 = scmp.eq.s32.totalorder 0, 0
    %p30 = pnand %p28, %p29
    %p31 = pneg %p30
    // Predicated region
    $region18: #{tpu_custom_call.1} parent=1 // pred_check
      _
    $region19: #{tpu_custom_call.1} parent=1 // pred_check_branch
      %33 = sbr.rel (%p30) target = $region21
    $region20: #{tpu_custom_call.1} parent=1 // pred_region
      %vm34 = vcmask 3072
      %35 = vst.msk [vmem:[#allocation2] sm:$0xf] %vm34, 0.0
      %36 = vst.msk [vmem:[#allocation2 + $0x4] sm:$0xf] %vm34, 0.0
      %37 = vst.msk [vmem:[#allocation3] sm:$0xf] %vm34, 0.0
      %38 = vst.msk [vmem:[#allocation3 + $0x4] sm:$0xf] %vm34, 0.0
    $region21: #{tpu_custom_call.1} parent=1 // pred_fallthru
      _
    %v39 = vld [vmem:[#allocation4] sm:$0xff]
    %v40 = vld [vmem:[#allocation4 + $0x8] sm:$0xff]
    %v41 = vld [vmem:[#allocation2] sm:$0xf]
    %v42 = vld [vmem:[#allocation2 + $0x4] sm:$0xf]
    %v45 = vcombine.high %v39, %v39
    %v46 = vcombine.high %v40, %v40
    %vm49 = vcmask 1043456
    %v50 = vsel %vm49, %v39, 0.0
    %v51 = vsel %vm49, %v45, 0.0
    %v52 = vadd.f32 %v50, %v51
    %53 = vadd.xlane.f32.xlu0 %v52
    %v54 = vpop.xlane.xlu0 %53
    %v55 = vsel %vm49, %v40, 0.0
    %v56 = vsel %vm49, %v46, 0.0
    %v57 = vadd.f32 %v55, %v56
    %58 = vadd.xlane.f32.xlu0 %v57
    %v59 = vpop.xlane.xlu0 %58
    %v60 = vadd.f32 %v41, %v54
    %v61 = vadd.f32 %v42, %v59
    %vm62 = vcmask 3072
    %63 = vst.msk [vmem:[#allocation2] sm:$0xf] %vm62, %v60
    %64 = vst.msk [vmem:[#allocation2 + $0x4] sm:$0xf] %vm62, %v61
    %v65 = vld [vmem:[#allocation3] sm:$0xf]
    %v66 = vld [vmem:[#allocation3 + $0x4] sm:$0xf]
    %v67 = vmul.f32 %v39, %v39
    %v68 = vmul.f32 %v40, %v40
    %v71 = vcombine.high %v67, %v67
    %v72 = vcombine.high %v68, %v68
    %v75 = vsel %vm49, %v67, 0.0
    %v76 = vsel %vm49, %v71, 0.0
    %v77 = vadd.f32 %v75, %v76
    %78 = vadd.xlane.f32.xlu0 %v77
    %v79 = vpop.xlane.xlu0 %78
    %v80 = vsel %vm49, %v68, 0.0
    %v81 = vsel %vm49, %v72, 0.0
    %v82 = vadd.f32 %v80, %v81
    %83 = vadd.xlane.f32.xlu0 %v82
    %v84 = vpop.xlane.xlu0 %83
    %v85 = vadd.f32 %v65, %v79
    %v86 = vadd.f32 %v66, %v84
    %87 = vst.msk [vmem:[#allocation3] sm:$0xf] %vm62, %v85
    %88 = vst.msk [vmem:[#allocation3 + $0x4] sm:$0xf] %vm62, %v86
    // Predicated region
    $region22: #{tpu_custom_call.1} parent=1 // pred_check
      _
    $region23: #{tpu_custom_call.1} parent=1 // pred_check_branch
      %90 = sbr.rel (%p30) target = $region25
    $region24: #{tpu_custom_call.1} parent=1 // pred_region
      %v91 = vld [vmem:[#allocation2] sm:$0xf]
      %v92 = vld [vmem:[#allocation3] sm:$0xf]
      %s93 = scalar_lea.vmem [#allocation2], 4
      %v94 = vld [vmem:[%s93] sm:$0xf]
      %v95 = vadd.f32 %v91, %v94
      %s96 = scalar_lea.vmem [#allocation3], 4
      %v97 = vld [vmem:[%s96] sm:$0xf]
      %v98 = vadd.f32 %v92, %v97
      %v99 = vmul.f32 %v95, 0.001953125
      %v100 = vmul.f32 %v98, 0.001953125
      %v101 = vmul.f32 %v99, %v99
      %v102 = vsub.f32 %v100, %v101
      %v103 = vadd.f32 %v102, 1e-05
      %v104 = vrsqrt.pop %v103
      %v105 = vld [vmem:[%s1] sm:$0xf]
      %v106 = vmul.f32 %v105, %v104
      %v107 = vld [vmem:[%s2] sm:$0xf]
      %v108 = vmul.f32 %v99, %v106
      %v109 = vsub.f32 %v107, %v108
      %110 = vst.msk [vmem:[%s3] sm:$0xf] %vm62, %v106
      %s111 = scalar_lea.vmem %s3, 4
      %112 = vst.msk [vmem:[%s111] sm:$0xf] %vm62, %v109
    $region25: #{tpu_custom_call.1} parent=1 // pred_fallthru
      _
    // Predicated region
    $region26: #{tpu_custom_call.1} parent=1 // pred_check
      _
    $region27: #{tpu_custom_call.1} parent=1 // pred_check_branch
      %114 = sbr.rel (0) target = $region29
    $region28: #{tpu_custom_call.1} parent=1 // pred_region
      _
    $region29: #{tpu_custom_call.1} parent=1 // pred_fallthru
      _
    // Predicated region
    $region30: #{tpu_custom_call.1} parent=1 // pred_check
      _
    $region31: #{tpu_custom_call.1} parent=1 // pred_check_branch
      %116 = sbr.rel (0) target = $region33
    $region32: #{tpu_custom_call.1} parent=1 // pred_region
      _
    $region33: #{tpu_custom_call.1} parent=1 // pred_fallthru
      _
    %117 = vsyncpa [#allocation5], 1

</llo_original>
